<compile_context>
chip_gen: v7x
topology: tpu7x:2x2x1
jax: 0.10.0
libtpu: 0.0.40
codegen_flags: <defaults>
</compile_context>

<pallas_src>
import functools
import math

import jax
import jax.numpy as jnp
from jax.experimental import pallas as pl
from jax.experimental.pallas import tpu as pltpu


# ----------------------------------------------------------------------------
# pe buffer construction (identical to the PyTorch __init__)
# ----------------------------------------------------------------------------
def make_pe(d_model: int, max_len: int = 5000, dtype=jnp.float32) -> jnp.ndarray:
    assert d_model % 2 == 0, "d_model must be even (same latent constraint as PyTorch)"
    position = jnp.arange(max_len, dtype=jnp.float32)[:, None]               # [max_len, 1]
    div_term = jnp.exp(
        jnp.arange(0, d_model, 2, dtype=jnp.float32) * (-math.log(10000.0) / d_model)
    )                                                                        # [d_model//2]
    angles = position * div_term                                             # [max_len, d_model//2]
    pe = jnp.zeros((max_len, 1, d_model), dtype=jnp.float32)
    pe = pe.at[:, 0, 0::2].set(jnp.sin(angles))
    pe = pe.at[:, 0, 1::2].set(jnp.cos(angles))
    return pe.astype(dtype)


# ----------------------------------------------------------------------------
# kernels
# ----------------------------------------------------------------------------
def _add_pe_sliced_kernel(x_ref, pe_ref, o_ref, *, reps: int, d: int):
    """x_ref/o_ref: (ts, reps*d); pe_ref: (ts, d).

    reps > 1 only occurs on the D % 128 == 0 path, so every slice below is
    lane-aligned: per-rep load/add/store keeps full-lane vst and never
    materializes a (ts, reps*d) copy of pe (removed jnp.tile).
    """
    pe = pe_ref[...]
    if reps == 1:
        o_ref[...] = x_ref[...] + pe
    else:
        for r in range(reps):
            sl = slice(r * d, (r + 1) * d)
            o_ref[:, sl] = x_ref[:, sl] + pe


def _add_pe_bcast_kernel(x_ref, pe_ref, o_ref):
    """x_ref/o_ref: (ts, bc, D); pe_ref: (ts, 1, D) -> sublane-broadcast add."""
    o_ref[...] = x_ref[...] + pe_ref[...]


# ----------------------------------------------------------------------------
# helpers
# ----------------------------------------------------------------------------
def _tpu_info():
    """(physical VMEM bytes per TensorCore, TensorCores per chip), safe fallbacks."""
    vmem = None
    cores = None
    try:
        info = pltpu.get_tpu_info()
        vmem = getattr(info, "vmem_capacity_bytes", None)
        for name in ("num_cores", "core_count", "tensorcores_per_chip", "num_tensorcores"):
            c = getattr(info, name, None)
            if isinstance(c, int) and c > 0:
                cores = c
                break
    except Exception:
        pass
    if not isinstance(vmem, int) or vmem <= 0:
        vmem = 64 * 1024 * 1024                    # conservative: v7x has the smallest VMEM
    if not isinstance(cores, int) or cores <= 0:
        cores = 2 if vmem <= 64 * 1024 * 1024 else 1   # v7x = 2 TCs, v5e/v6e = 1 TC
    return int(vmem), int(cores)


def _choose_row_tile(s_rows: int, row_bytes: int, budget: int, num_cores: int, grid_cols: int) -> int:
    """Largest legal sequence-row tile that fits the pipelined VMEM budget.

    The megacore split along S is only applied when (a) the part has >= 2
    TensorCores, (b) the grid has no other parallel axis, and (c) a clean
    2-way split is possible (avoids 2:1 TC load imbalance, e.g. S=24 -> 16+8).
    """
    ts = max(1, budget // max(1, row_bytes))
    if ts >= s_rows:
        if num_cores >= 2 and grid_cols == 1 and s_rows >= 16 and s_rows % 16 == 0:
            return s_rows // 2                     # clean 2-way split for 2 TCs
        return s_rows                              # full-extent block (single step)
    ts = max(8, (ts // 8) * 8)                     # sublane dim: multiple of 8
    return min(ts, s_rows)


# ----------------------------------------------------------------------------
# wrapper
# ----------------------------------------------------------------------------
def positional_encoding(
    x: jnp.ndarray,
    pe: jnp.ndarray,
    *,
    vmem_budget_bytes: int | None = None,
    vmem_limit_bytes: int | None = None,
    donate_x: bool = False,
) -> jnp.ndarray:
    """x: [S, B, D]; pe: [max_len, 1, D] (or [max_len, D]); returns x + pe[:S]."""
    S, B, D = x.shape
    assert pe.shape[0] >= S and pe.shape[-1] == D
    itemsize = jnp.dtype(x.dtype).itemsize
    BD = B * D

    phys_vmem, num_cores = _tpu_info()
    if vmem_budget_bytes is None:
        vmem_budget_bytes = phys_vmem // 2           # 32 MiB on v7x, 64 MiB on v5e/v6e
    if vmem_limit_bytes is None:
        vmem_limit_bytes = (phys_vmem * 3) // 4      # 48 MiB on v7x, 96 MiB on v5e/v6e

    cp = pltpu.CompilerParams(
        dimension_semantics=("parallel", "parallel"),
        vmem_limit_bytes=int(vmem_limit_bytes),
    )
    alias = {0: 0} if donate_x else {}

    # pe as a squeezed [S, D] slab in x's dtype (see dtype note in header).
    pe2 = pe.reshape(pe.shape[0], -1)[:S].astype(x.dtype)

    # ---- Case A: tiny flattened width -> pack k sequence rows per lane row ----
    if BD < 128:
        pe_full = jnp.tile(pe2, (1, B))              # [S, B*D], tiny (wrapper-side)
        k = 1
        for cand in range(2, S + 1):
            if S % cand == 0 and cand * BD >= 128:
                k = cand
                break
        s_rows, width = S // k, k * BD
        x2 = x.reshape(s_rows, width)                # free reshape of contiguous x
        pe_k = pe_full.reshape(s_rows, width)
        row_bytes = 2 * 3 * width * itemsize         # double-buffered x + out + pe rows
        ts = _choose_row_tile(s_rows, row_bytes, vmem_budget_bytes, num_cores, grid_cols=1)
        kernel = functools.partial(_add_pe_sliced_kernel, reps=1, d=width)
        out2 = pl.pallas_call(
            kernel,
            out_shape=jax.ShapeDtypeStruct((s_rows, width), x.dtype),
            grid_spec=pltpu.PrefetchScalarGridSpec(
                num_scalar_prefetch=0,
                grid=(pl.cdiv(s_rows, ts), 1),
                in_specs=[
                    pl.BlockSpec((ts, width), lambda i, j: (i, 0)),
                    pl.BlockSpec((ts, width), lambda i, j: (i, 0)),
                ],
                out_specs=pl.BlockSpec((ts, width), lambda i, j: (i, 0)),
            ),
            compiler_params=cp,
            input_output_aliases=alias,
        )(x2, pe_k)
        return out2.reshape(S, B, D)

    # ---- Case B: lane-aligned d_model -> flattened [S, B*D] slab, batch chunks ----
    if D % 128 == 0:
        max_bc = max(1, vmem_budget_bytes // (2 * 8 * 2 * D * itemsize))
        bc = max(1, min(B, 8, max_bc))               # <= 8 unrolled lane-aligned slice adds
        tn = bc * D
        x2 = x.reshape(S, BD)                        # free reshape, lane-dense
        grid_cols = pl.cdiv(BD, tn)
        row_bytes = 2 * (2 * tn + D) * itemsize      # no jnp.tile temp -> budget is exact
        ts = _choose_row_tile(S, row_bytes, vmem_budget_bytes, num_cores, grid_cols)
        kernel = functools.partial(_add_pe_sliced_kernel, reps=bc, d=D)
        out2 = pl.pallas_call(
            kernel,
            out_shape=jax.ShapeDtypeStruct((S, BD), x.dtype),
            grid_spec=pltpu.PrefetchScalarGridSpec(
                num_scalar_prefetch=0,
                grid=(pl.cdiv(S, ts), grid_cols),
                in_specs=[
                    pl.BlockSpec((ts, tn), lambda i, j: (i, j)),
                    # constant along j -> pe tile is not re-fetched across batch chunks
                    pl.BlockSpec((ts, D), lambda i, j: (i, 0)),
                ],
                out_specs=pl.BlockSpec((ts, tn), lambda i, j: (i, j)),
            ),
            compiler_params=cp,
            input_output_aliases=alias,
        )(x2, pe2)
        return out2.reshape(S, B, D)

    # ---- Case C: D not a multiple of 128 but B*D large ----
    # Keep 3-D (ts, bc, D) blocks and sublane-broadcast pe (ts, 1, D) in-kernel.
    # Avoids a huge per-batch unroll and an extra zero-padding pass over x; the
    # masked stores on the D axis are the unavoidable cost of an unaligned d_model.
    bc = B if B <= 8 else 8                          # 2nd-minor block dim: full or %8 == 0
    pe3 = pe2[:, None, :]                            # [S, 1, D]
    row_bytes = 2 * (2 * bc * D + D) * itemsize + bc * D * itemsize  # + bcast temp headroom
    ts = _choose_row_tile(S, row_bytes, vmem_budget_bytes, num_cores, pl.cdiv(B, bc))
    out = pl.pallas_call(
        _add_pe_bcast_kernel,
        out_shape=jax.ShapeDtypeStruct((S, B, D), x.dtype),
        grid_spec=pltpu.PrefetchScalarGridSpec(
            num_scalar_prefetch=0,
            grid=(pl.cdiv(S, ts), pl.cdiv(B, bc)),
            in_specs=[
                pl.BlockSpec((ts, bc, D), lambda i, j: (i, j, 0)),
                pl.BlockSpec((ts, 1, D), lambda i, j: (i, 0, 0)),
            ],
            out_specs=pl.BlockSpec((ts, bc, D), lambda i, j: (i, j, 0)),
        ),
        compiler_params=cp,
        input_output_aliases=alias,
    )(x, pe3)
    return out


# ----------------------------------------------------------------------------
# demo / self-check
# ----------------------------------------------------------------------------
if __name__ == "__main__":
    key = jax.random.PRNGKey(0)
    k1, k2 = jax.random.split(key)

    # 1) Small shape consistent with the module: seq=8, batch=2, d_model=32
    #    (exercises the tiny-B*D row-packing path).
    S, B, D = 8, 2, 32
    x = jax.random.normal(k1, (S, B, D), dtype=jnp.float32)
    pe = make_pe(d_model=D, max_len=64)
    out = jax.block_until_ready(positional_encoding(x, pe))
    ref = x + pe[:S]
    assert out.shape == (S, B, D)
    assert jnp.allclose(out, ref, atol=1e-6), "mismatch vs reference (small shape)"

    # 2) Lane-aligned d_model (the usual transformer case; exercises the
    #    batch-chunked, unrolled slice-add path).
    S2, B2, D2 = 32, 4, 128
    x_b = jax.random.normal(k2, (S2, B2, D2), dtype=jnp.float32)
    pe_b = make_pe(d_model=D2, max_len=64)
    out_b = jax.block_until_ready(positional_encoding(x_b, pe_b))
    ref_b = x_b + pe_b[:S2]
    assert jnp.allclose(out_b, ref_b, atol=1e-6), "mismatch vs reference (aligned shape)"

    print("KERNEL_OK")
</pallas_src>

<mosaic_0001>
module attributes {stable_mosaic.version = 11 : i64} {
  func.func @_add_pe_sliced_kernel(%arg0: i32, %arg1: i32, %arg2: memref<4x128xf32, #tpu.memory_space<vmem>>, %arg3: memref<4x128xf32, #tpu.memory_space<vmem>>, %arg4: memref<4x128xf32, #tpu.memory_space<vmem>>) attributes {dimension_semantics = [#tpu.dimension_semantics<parallel>, #tpu.dimension_semantics<parallel>], iteration_bounds = array<i64: 1, 1>, scalar_prefetch = 0 : i64, scratch_operands = 0 : i64, tpu.core_type = #tpu.core_type<tc>, window_params = [{transform_indices = @transform_0, window_bounds = array<i64: 4, 128>}, {transform_indices = @transform_1, window_bounds = array<i64: 4, 128>}, {transform_indices = @transform_2, window_bounds = array<i64: 4, 128>}]} {
    %c0 = arith.constant 0 : index
    %c0_0 = arith.constant 0 : index
    %0 = vector.load %arg3[%c0, %c0_0] : memref<4x128xf32, #tpu.memory_space<vmem>>, vector<4x128xf32>
    %c0_1 = arith.constant 0 : index
    %c0_2 = arith.constant 0 : index
    %1 = vector.load %arg2[%c0_1, %c0_2] : memref<4x128xf32, #tpu.memory_space<vmem>>, vector<4x128xf32>
    %2 = arith.addf %1, %0 : vector<4x128xf32>
    %c0_3 = arith.constant 0 : index
    %c0_4 = arith.constant 0 : index
    %3 = vector.load %arg4[%c0_3, %c0_4] : memref<4x128xf32, #tpu.memory_space<vmem>>, vector<4x128xf32>
    tpu.vector_store %arg4[%c0_3, %c0_4], %2 {strides = array<i32>} : memref<4x128xf32, #tpu.memory_space<vmem>>, vector<4x128xf32>,
    return
  }
  func.func @transform_0(%arg0: i32, %arg1: i32) -> (i32, i32) {
    %c0_i32 = arith.constant 0 : i32
    %c0_i32_0 = arith.constant 0 : i32
    return %arg0, %c0_i32 : i32, i32
  }
  func.func @transform_1(%arg0: i32, %arg1: i32) -> (i32, i32) {
    %c0_i32 = arith.constant 0 : i32
    %c0_i32_0 = arith.constant 0 : i32
    return %arg0, %c0_i32 : i32, i32
  }
  func.func @transform_2(%arg0: i32, %arg1: i32) -> (i32, i32) {
    %c0_i32 = arith.constant 0 : i32
    %c0_i32_0 = arith.constant 0 : i32
    return %arg0, %c0_i32 : i32, i32
  }
}

</mosaic_0001>

<llo_original>
// kernel: tpu_custom_call.1
$region0: #{tpu_custom_call.1}
  #allocation0 [shape = 'u32[]', space=smem, size = 0x4, offset = 0x4, fixed_abs, tag = 'smem constant byte address 0x4 - core index']
  #allocation1 [shape = 'u32[144,128]{1,0:T(1,128)}', space=vmem, size = 0x12000, scoped, tag = 'internal scratch']
  %s0 = inlined_call_operand.hbm [shape: f32[4,128], index: 0, kind: input, shape index: {}]
  %s1 = inlined_call_operand.hbm [shape: f32[4,128], index: 1, kind: input, shape index: {}]
  %s2 = inlined_call_operand.hbm [shape: f32[4,128], index: 2, kind: output, shape index: {}]
  %s3 = sld [smem:[#allocation0]]
  $region26: #{tpu_custom_call.1} parent=0
    _
  %s5 = ssub.s32 1, %s3
  %s6 = scalar_select 0, %s5, %s3
  $region1: #{tpu_custom_call.1} parent=0
    #allocation2 [shape = 'u8[2048]{0}', space=vmem, size = 0x800, scoped, tag = 'input window, operand 0, single buffered']
    #allocation3 [shape = 's32[1]{0}', space=sflag, size = 0x4, scoped, tag = 'scoped memory for tpu_custom_call.1']
    #allocation4 [shape = 's32[1]{0}', space=sflag, size = 0x4, scoped, tag = 'scoped memory for tpu_custom_call.1']
    #allocation5 [shape = 'u8[2048]{0}', space=vmem, size = 0x800, scoped, tag = 'input window, operand 1, single buffered']
    #allocation6 [shape = 's32[1]{0}', space=sflag, size = 0x4, scoped, tag = 'scoped memory for tpu_custom_call.1']
    #allocation7 [shape = 'u8[2048]{0}', space=vmem, size = 0x800, scoped, tag = 'output window, operand 0, single buffered']
    %7 = vsyncpa [#allocation3], 0
    %8 = vsyncpa [#allocation6], 0
    %9 = vsyncpa [#allocation4], 0
    // Predicated region
    $region2: #{tpu_custom_call.1} parent=1 // pred_check
      _
    $region3: #{tpu_custom_call.1} parent=1 // pred_check_branch
      %11 = sbr.rel (0) target = $region5
    $region4: #{tpu_custom_call.1} parent=1 // pred_region
      %s13 = ssub.s32 64, 64
      %14 = vsyncadd [#allocation3], %s13
      %s16 = sshll.u32 [#allocation2], 4
      %s17 = int_to_ptr.vmem [resolvable:$true] %s16
      %19 = dma.hbm_to_vmem [thread:$0]  %s0, 64, %s17, [#allocation3]
    $region5: #{tpu_custom_call.1} parent=1 // pred_fallthru
      _
    // Predicated region
    $region6: #{tpu_custom_call.1} parent=1 // pred_check
      _
    $region7: #{tpu_custom_call.1} parent=1 // pred_check_branch
      %21 = sbr.rel (0) target = $region9
    $region8: #{tpu_custom_call.1} parent=1 // pred_region
      %s23 = ssub.s32 64, 64
      %24 = vsyncadd [#allocation6], %s23
      %s26 = sshll.u32 [#allocation5], 4
      %s27 = int_to_ptr.vmem [resolvable:$true] %s26
      %29 = dma.hbm_to_vmem [thread:$0]  %s1, 64, %s27, [#allocation6]
    $region9: #{tpu_custom_call.1} parent=1 // pred_fallthru
      _
    // Predicated region
    $region10: #{tpu_custom_call.1} parent=1 // pred_check
      _
    $region11: #{tpu_custom_call.1} parent=1 // pred_check_branch
      %31 = sbr.rel (0) target = $region13
    $region12: #{tpu_custom_call.1} parent=1 // pred_region
      %32 = dma.done [#allocation3], 64
    $region13: #{tpu_custom_call.1} parent=1 // pred_fallthru
      _
    // Predicated region
    $region14: #{tpu_custom_call.1} parent=1 // pred_check
      _
    $region15: #{tpu_custom_call.1} parent=1 // pred_check_branch
      %34 = sbr.rel (0) target = $region17
    $region16: #{tpu_custom_call.1} parent=1 // pred_region
      %35 = dma.done [#allocation6], 64
    $region17: #{tpu_custom_call.1} parent=1 // pred_fallthru
      _
    %v36 = vld [vmem:[#allocation5] sm:$0xf]
    %v37 = vld [vmem:[#allocation2] sm:$0xf]
    %v38 = vadd.f32 %v37, %v36
    %39 = vst [vmem:[#allocation7] sm:$0xf] %v38
    // Predicated region
    $region18: #{tpu_custom_call.1} parent=1 // pred_check
      _
    $region19: #{tpu_custom_call.1} parent=1 // pred_check_branch
      %41 = sbr.rel (0) target = $region21
    $region20: #{tpu_custom_call.1} parent=1 // pred_region
      %s43 = ssub.s32 64, 64
      %44 = vsyncadd [#allocation4], %s43
      %s46 = sshll.u32 [#allocation7], 4
      %s47 = int_to_ptr.vmem [resolvable:$true] %s46
      %49 = dma.vmem_to_hbm [thread:$0]  %s47, 64, %s2, [#allocation4]
    $region21: #{tpu_custom_call.1} parent=1 // pred_fallthru
      _
    // Predicated region
    $region22: #{tpu_custom_call.1} parent=1 // pred_check
      _
    $region23: #{tpu_custom_call.1} parent=1 // pred_check_branch
      %51 = sbr.rel (0) target = $region25
    $region24: #{tpu_custom_call.1} parent=1 // pred_region
      %52 = dma.done [#allocation4], 64
    $region25: #{tpu_custom_call.1} parent=1 // pred_fallthru
      _
    %53 = vsyncpa [#allocation3], 1
    %54 = vsyncpa [#allocation6], 1
    %55 = vsyncpa [#allocation4], 1

</llo_original>
